<compile_context>
chip_gen: v7x
topology: tpu7x:2x2x1
jax: 0.10.0
libtpu: 0.0.40
codegen_flags: <defaults>
</compile_context>

<pallas_src>
import functools

import jax
import jax.numpy as jnp
from jax.experimental import pallas as pl
from jax.experimental.pallas import tpu as pltpu

EPS = 0.1  # label smoothing factor from module __init__ default

_MAX_BLOCK_N = 512   # rows per tile (multiple of 8)
_MAX_BLOCK_C = 2048  # classes per tile (multiple of 128)


def _ls_ce_kernel(logits_ref, target_ref, smooth_ref, nll_ref,
                  m_sc, l_sc, sx_sc, tx_sc, *,
                  n_rows, n_cols, tn, tc, rows_even, cols_even):
    """One (row-block, class-block) grid step.

    logits_ref : (tn, tc) native dtype     target_ref : (tn, 1) int32
    smooth_ref / nll_ref : (1, 8, 128) f32 per-row-block partial sums
    m_sc/l_sc/sx_sc/tx_sc : (tn, 1) f32 running state across class blocks
    """
    i = pl.program_id(0)          # row-block index
    j = pl.program_id(1)          # class-block index (reduction axis, last)
    last_j = pl.num_programs(1) - 1

    @pl.when(j == 0)
    def _init():
        m_sc[...] = jnp.full((tn, 1), -jnp.inf, jnp.float32)
        l_sc[...] = jnp.zeros((tn, 1), jnp.float32)
        sx_sc[...] = jnp.zeros((tn, 1), jnp.float32)
        tx_sc[...] = jnp.zeros((tn, 1), jnp.float32)

    x = logits_ref[...].astype(jnp.float32)                       # (tn, tc)

    # class indices for this block as a single lane-row; broadcast as needed
    col_idx = j * tc + jax.lax.broadcasted_iota(jnp.int32, (1, tc), 1)

    if cols_even:                       # static: no padded columns, no selects
        x_m = x
        x_s = x
    else:
        col_valid = col_idx < n_cols                              # (1, tc)
        x_m = jnp.where(col_valid, x, -jnp.inf)
        x_s = jnp.where(col_valid, x, 0.0)

    # ---- online logsumexp update ----------------------------------------
    m_prev = m_sc[...]
    m_new = jnp.maximum(m_prev, jnp.max(x_m, axis=1, keepdims=True))
    alpha = jnp.exp(m_prev - m_new)                 # first block: exp(-inf)=0
    p_sum = jnp.sum(jnp.exp(x_m - m_new), axis=1, keepdims=True)
    l_sc[...] = l_sc[...] * alpha + p_sum
    m_sc[...] = m_new

    # ---- running sum of logits over classes (for the smoothing term) ----
    sx_sc[...] += jnp.sum(x_s, axis=1, keepdims=True)

    # ---- target logit via masked select-reduce (no one-hot multiply) -----
    tgt = target_ref[...]                                         # (tn, 1)
    tx_sc[...] += jnp.sum(jnp.where(col_idx == tgt, x, 0.0),
                          axis=1, keepdims=True)

    # ---- finalize this row block on the last class block -----------------
    @pl.when(j == last_j)
    def _finalize():
        lse = m_sc[...] + jnp.log(l_sc[...])                      # (tn, 1)
        smooth_row = n_cols * lse - sx_sc[...]    # = -sum_j log_softmax[i, j]
        nll_row = lse - tx_sc[...]                # = -log_softmax[i, t_i]

        if rows_even:                   # static: no padded rows in this block
            s = jnp.sum(smooth_row)
            t = jnp.sum(nll_row)
        else:
            row_idx = i * tn + jax.lax.broadcasted_iota(jnp.int32, (tn, 1), 0)
            row_valid = row_idx < n_rows
            s = jnp.sum(jnp.where(row_valid, smooth_row, 0.0))
            t = jnp.sum(jnp.where(row_valid, nll_row, 0.0))

        # lane-dense (unmasked) stores of the per-block partials
        smooth_ref[...] = jnp.full(smooth_ref.shape, s, dtype=jnp.float32)
        nll_ref[...] = jnp.full(nll_ref.shape, t, dtype=jnp.float32)


def label_smoothing_cross_entropy(logits: jax.Array, target: jax.Array, *,
                                  eps: float = EPS,
                                  block_n: int | None = None,
                                  block_c: int | None = None) -> jax.Array:
    """logits: (N, C) float (f32/bf16); target: (N,) int. Scalar f32 loss."""
    n, c = logits.shape
    target2d = target.astype(jnp.int32).reshape(n, 1)

    # Tile selection: full extent when small (always legal), otherwise
    # (8,128)-aligned tiles with in-kernel masking only for boundary blocks.
    tn = block_n if block_n is not None else (n if n <= _MAX_BLOCK_N else _MAX_BLOCK_N)
    tc = block_c if block_c is not None else (c if c <= _MAX_BLOCK_C else _MAX_BLOCK_C)
    g_rows = -(-n // tn)
    g_cols = -(-c // tc)

    kernel = functools.partial(
        _ls_ce_kernel, n_rows=n, n_cols=c, tn=tn, tc=tc,
        rows_even=(n % tn == 0), cols_even=(c % tc == 0))

    smooth_part, nll_part = pl.pallas_call(
        kernel,
        grid=(g_rows, g_cols),
        in_specs=[
            pl.BlockSpec((tn, tc), lambda i, j: (i, j)),   # logits tile
            pl.BlockSpec((tn, 1), lambda i, j: (i, 0)),    # targets (resident over j)
        ],
        out_specs=[
            pl.BlockSpec((1, 8, 128), lambda i, j: (i, 0, 0)),
            pl.BlockSpec((1, 8, 128), lambda i, j: (i, 0, 0)),
        ],
        out_shape=[
            jax.ShapeDtypeStruct((g_rows, 8, 128), jnp.float32),
            jax.ShapeDtypeStruct((g_rows, 8, 128), jnp.float32),
        ],
        scratch_shapes=[
            pltpu.VMEM((tn, 1), jnp.float32),   # running max m
            pltpu.VMEM((tn, 1), jnp.float32),   # running sum-exp l
            pltpu.VMEM((tn, 1), jnp.float32),   # running sum of logits
            pltpu.VMEM((tn, 1), jnp.float32),   # target logit
        ],
        compiler_params=pltpu.CompilerParams(
            dimension_semantics=("parallel", "arbitrary"),
            vmem_limit_bytes=48 * 1024 * 1024,  # headroom-safe on v5e/v6e/v7x
        ),
    )(logits, target2d)

    # Final mean + label-smoothing mix, applied once outside the kernel.
    smooth_sum = jnp.sum(smooth_part[:, 0, 0])
    nll_sum = jnp.sum(nll_part[:, 0, 0])
    return smooth_sum * (eps / c) / n + (1.0 - eps) * nll_sum / n


def _reference(logits, target, eps=EPS):
    # pure-JAX reference mirroring the PyTorch module (reduction='mean')
    c = logits.shape[1]
    log_preds = jax.nn.log_softmax(logits.astype(jnp.float32), axis=1)
    smooth = jnp.mean(-jnp.sum(log_preds, axis=1))
    nll = jnp.mean(-jnp.take_along_axis(
        log_preds, target[:, None].astype(jnp.int32), axis=1)[:, 0])
    return smooth * eps / c + (1.0 - eps) * nll


if __name__ == "__main__":
    key = jax.random.PRNGKey(0)
    k1, k2, k3, k4 = jax.random.split(key, 4)

    # Case 1: small, single-block (N=8, C=32), native f32 logits.
    N, C = 8, 32
    logits = jax.random.normal(k1, (N, C), dtype=jnp.float32)
    target = jax.random.randint(k2, (N,), 0, C, dtype=jnp.int32)
    loss = jax.block_until_ready(label_smoothing_cross_entropy(logits, target))
    ref = _reference(logits, target)
    assert jnp.allclose(loss, ref, atol=1e-5, rtol=1e-5), (loss, ref)

    # Case 2: multi-block grid over both axes with boundary padding
    # (N=20 rows / 8-row tiles, C=300 classes / 128-lane tiles), bf16 logits.
    N2, C2 = 20, 300
    logits2 = jax.random.normal(k3, (N2, C2), dtype=jnp.float32).astype(jnp.bfloat16)
    target2 = jax.random.randint(k4, (N2,), 0, C2, dtype=jnp.int32)
    loss2 = jax.block_until_ready(
        label_smoothing_cross_entropy(logits2, target2, block_n=8, block_c=128))
    ref2 = _reference(logits2.astype(jnp.float32), target2)
    assert jnp.allclose(loss2, ref2, atol=1e-4, rtol=1e-4), (loss2, ref2)

    # Case 3: multi-block, evenly-divisible shapes (mask-free fast path),
    # exercises the static rows_even / cols_even specialization.
    N3, C3 = 16, 256
    logits3 = jax.random.normal(k1, (N3, C3), dtype=jnp.float32)
    target3 = jax.random.randint(k2, (N3,), 0, C3, dtype=jnp.int32)
    loss3 = jax.block_until_ready(
        label_smoothing_cross_entropy(logits3, target3, block_n=8, block_c=128))
    ref3 = _reference(logits3, target3)
    assert jnp.allclose(loss3, ref3, atol=1e-5, rtol=1e-5), (loss3, ref3)

    print("KERNEL_OK")
</pallas_src>

<mosaic_0001>
module attributes {stable_mosaic.version = 11 : i64} {
  func.func @_ls_ce_kernel(%arg0: i32, %arg1: i32, %arg2: memref<8x32xf32, #tpu.memory_space<vmem>>, %arg3: memref<8x1xi32, #tpu.memory_space<vmem>>, %arg4: memref<1x8x128xf32, #tpu.memory_space<vmem>>, %arg5: memref<1x8x128xf32, #tpu.memory_space<vmem>>, %arg6: memref<8x1xf32, #tpu.memory_space<vmem>>, %arg7: memref<8x1xf32, #tpu.memory_space<vmem>>, %arg8: memref<8x1xf32, #tpu.memory_space<vmem>>, %arg9: memref<8x1xf32, #tpu.memory_space<vmem>>) attributes {dimension_semantics = [#tpu.dimension_semantics<parallel>, #tpu.dimension_semantics<arbitrary>], iteration_bounds = array<i64: 1, 1>, scalar_prefetch = 0 : i64, scratch_operands = 4 : i64, tpu.core_type = #tpu.core_type<tc>, window_params = [{transform_indices = @transform_0, window_bounds = array<i64: 8, 32>}, {transform_indices = @transform_1, window_bounds = array<i64: 8, 1>}, {transform_indices = @transform_2, window_bounds = array<i64: 1, 8, 128>}, {transform_indices = @transform_3, window_bounds = array<i64: 1, 8, 128>}]} {
    %c0_i32 = arith.constant 0 : i32
    %0 = arith.cmpi eq, %arg1, %c0_i32 : i32
    %1 = arith.extui %0 : i1 to i32
    %c0_i32_0 = arith.constant 0 : i32
    %2 = arith.cmpi ne, %1, %c0_i32_0 : i32
    scf.if %2 {
      %cst_26 = arith.constant 0xFF800000 : f32
      %43 = vector.broadcast %cst_26 : f32 to vector<8x1xf32>
      %c0_27 = arith.constant 0 : index
      %c0_28 = arith.constant 0 : index
      %44 = vector.load %arg6[%c0_27, %c0_28] : memref<8x1xf32, #tpu.memory_space<vmem>>, vector<8x1xf32>
      tpu.vector_store %arg6[%c0_27, %c0_28], %43 {strides = array<i32>} : memref<8x1xf32, #tpu.memory_space<vmem>>, vector<8x1xf32>,
      %cst_29 = arith.constant 0.000000e+00 : f32
      %45 = vector.broadcast %cst_29 : f32 to vector<8x1xf32>
      %c0_30 = arith.constant 0 : index
      %c0_31 = arith.constant 0 : index
      %46 = vector.load %arg7[%c0_30, %c0_31] : memref<8x1xf32, #tpu.memory_space<vmem>>, vector<8x1xf32>
      tpu.vector_store %arg7[%c0_30, %c0_31], %45 {strides = array<i32>} : memref<8x1xf32, #tpu.memory_space<vmem>>, vector<8x1xf32>,
      %cst_32 = arith.constant 0.000000e+00 : f32
      %47 = vector.broadcast %cst_32 : f32 to vector<8x1xf32>
      %c0_33 = arith.constant 0 : index
      %c0_34 = arith.constant 0 : index
      %48 = vector.load %arg8[%c0_33, %c0_34] : memref<8x1xf32, #tpu.memory_space<vmem>>, vector<8x1xf32>
      tpu.vector_store %arg8[%c0_33, %c0_34], %47 {strides = array<i32>} : memref<8x1xf32, #tpu.memory_space<vmem>>, vector<8x1xf32>,
      %cst_35 = arith.constant 0.000000e+00 : f32
      %49 = vector.broadcast %cst_35 : f32 to vector<8x1xf32>
      %c0_36 = arith.constant 0 : index
      %c0_37 = arith.constant 0 : index
      %50 = vector.load %arg9[%c0_36, %c0_37] : memref<8x1xf32, #tpu.memory_space<vmem>>, vector<8x1xf32>
      tpu.vector_store %arg9[%c0_36, %c0_37], %49 {strides = array<i32>} : memref<8x1xf32, #tpu.memory_space<vmem>>, vector<8x1xf32>,
    } else {
    }
    %c0 = arith.constant 0 : index
    %c0_1 = arith.constant 0 : index
    %3 = vector.load %arg2[%c0, %c0_1] : memref<8x32xf32, #tpu.memory_space<vmem>>, vector<8x32xf32>
    %c32_i32 = arith.constant 32 : i32
    %4 = arith.muli %arg1, %c32_i32 : i32
    %5 = tpu.iota {dimensions = array<i32: 1>} : vector<1x32xi32>
    %6 = vector.broadcast %4 : i32 to vector<1x32xi32>
    %7 = arith.addi %6, %5 : vector<1x32xi32>
    %c0_2 = arith.constant 0 : index
    %c0_3 = arith.constant 0 : index
    %8 = vector.load %arg6[%c0_2, %c0_3] : memref<8x1xf32, #tpu.memory_space<vmem>>, vector<8x1xf32>
    %cst = arith.constant dense<0xFF800000> : vector<8xf32>
    %9 = vector.multi_reduction <maximumf>, %3, %cst [1] : vector<8x32xf32> to vector<8xf32>
    %10 = vector.shape_cast %9 : vector<8xf32> to vector<8x1xf32>
    %11 = arith.maximumf %8, %10 : vector<8x1xf32>
    %12 = arith.subf %8, %11 : vector<8x1xf32>
    %13 = math.exp %12 : vector<8x1xf32>
    %14 = vector.broadcast %11 : vector<8x1xf32> to vector<8x32xf32>
    %15 = arith.subf %3, %14 : vector<8x32xf32>
    %16 = math.exp %15 : vector<8x32xf32>
    %cst_4 = arith.constant dense<0.000000e+00> : vector<8xf32>
    %17 = vector.multi_reduction <add>, %16, %cst_4 [1] : vector<8x32xf32> to vector<8xf32>
    %18 = vector.shape_cast %17 : vector<8xf32> to vector<8x1xf32>
    %c0_5 = arith.constant 0 : index
    %c0_6 = arith.constant 0 : index
    %19 = vector.load %arg7[%c0_5, %c0_6] : memref<8x1xf32, #tpu.memory_space<vmem>>, vector<8x1xf32>
    %20 = arith.mulf %19, %13 : vector<8x1xf32>
    %21 = arith.addf %20, %18 : vector<8x1xf32>
    %c0_7 = arith.constant 0 : index
    %c0_8 = arith.constant 0 : index
    %22 = vector.load %arg7[%c0_7, %c0_8] : memref<8x1xf32, #tpu.memory_space<vmem>>, vector<8x1xf32>
    tpu.vector_store %arg7[%c0_7, %c0_8], %21 {strides = array<i32>} : memref<8x1xf32, #tpu.memory_space<vmem>>, vector<8x1xf32>,
    %c0_9 = arith.constant 0 : index
    %c0_10 = arith.constant 0 : index
    %23 = vector.load %arg6[%c0_9, %c0_10] : memref<8x1xf32, #tpu.memory_space<vmem>>, vector<8x1xf32>
    tpu.vector_store %arg6[%c0_9, %c0_10], %11 {strides = array<i32>} : memref<8x1xf32, #tpu.memory_space<vmem>>, vector<8x1xf32>,
    %c0_11 = arith.constant 0 : index
    %c0_12 = arith.constant 0 : index
    %24 = vector.load %arg8[%c0_11, %c0_12] : memref<8x1xf32, #tpu.memory_space<vmem>>, vector<8x1xf32>
    %cst_13 = arith.constant dense<0.000000e+00> : vector<8xf32>
    %25 = vector.multi_reduction <add>, %3, %cst_13 [1] : vector<8x32xf32> to vector<8xf32>
    %26 = vector.shape_cast %25 : vector<8xf32> to vector<8x1xf32>
    %27 = arith.addf %24, %26 : vector<8x1xf32>
    %c0_14 = arith.constant 0 : index
    %c0_15 = arith.constant 0 : index
    %28 = vector.load %arg8[%c0_14, %c0_15] : memref<8x1xf32, #tpu.memory_space<vmem>>, vector<8x1xf32>
    tpu.vector_store %arg8[%c0_14, %c0_15], %27 {strides = array<i32>} : memref<8x1xf32, #tpu.memory_space<vmem>>, vector<8x1xf32>,
    %c0_16 = arith.constant 0 : index
    %c0_17 = arith.constant 0 : index
    %29 = vector.load %arg3[%c0_16, %c0_17] : memref<8x1xi32, #tpu.memory_space<vmem>>, vector<8x1xi32>
    %c0_18 = arith.constant 0 : index
    %c0_19 = arith.constant 0 : index
    %30 = vector.load %arg9[%c0_18, %c0_19] : memref<8x1xf32, #tpu.memory_space<vmem>>, vector<8x1xf32>
    %31 = vector.broadcast %7 : vector<1x32xi32> to vector<8x32xi32>
    %32 = vector.broadcast %29 : vector<8x1xi32> to vector<8x32xi32>
    %33 = arith.cmpi eq, %31, %32 : vector<8x32xi32>
    %cst_20 = arith.constant 0.000000e+00 : f32
    %34 = vector.broadcast %cst_20 : f32 to vector<8x32xf32>
    %35 = arith.select %33, %3, %34 : vector<8x32xi1>, vector<8x32xf32>
    %cst_21 = arith.constant dense<0.000000e+00> : vector<8xf32>
    %36 = vector.multi_reduction <add>, %35, %cst_21 [1] : vector<8x32xf32> to vector<8xf32>
    %37 = vector.shape_cast %36 : vector<8xf32> to vector<8x1xf32>
    %38 = arith.addf %30, %37 : vector<8x1xf32>
    %c0_22 = arith.constant 0 : index
    %c0_23 = arith.constant 0 : index
    %39 = vector.load %arg9[%c0_22, %c0_23] : memref<8x1xf32, #tpu.memory_space<vmem>>, vector<8x1xf32>
    tpu.vector_store %arg9[%c0_22, %c0_23], %38 {strides = array<i32>} : memref<8x1xf32, #tpu.memory_space<vmem>>, vector<8x1xf32>,
    %c0_i32_24 = arith.constant 0 : i32
    %40 = arith.cmpi eq, %arg1, %c0_i32_24 : i32
    %41 = arith.extui %40 : i1 to i32
    %c0_i32_25 = arith.constant 0 : i32
    %42 = arith.cmpi ne, %41, %c0_i32_25 : i32
    scf.if %42 {
      %c0_26 = arith.constant 0 : index
      %c0_27 = arith.constant 0 : index
      %43 = vector.load %arg6[%c0_26, %c0_27] : memref<8x1xf32, #tpu.memory_space<vmem>>, vector<8x1xf32>
      %c0_28 = arith.constant 0 : index
      %c0_29 = arith.constant 0 : index
      %44 = vector.load %arg7[%c0_28, %c0_29] : memref<8x1xf32, #tpu.memory_space<vmem>>, vector<8x1xf32>
      %45 = math.log %44 : vector<8x1xf32>
      %46 = arith.addf %43, %45 : vector<8x1xf32>
      %cst_30 = arith.constant 3.200000e+01 : f32
      %47 = vector.broadcast %cst_30 : f32 to vector<8x1xf32>
      %48 = arith.mulf %47, %46 : vector<8x1xf32>
      %c0_31 = arith.constant 0 : index
      %c0_32 = arith.constant 0 : index
      %49 = vector.load %arg8[%c0_31, %c0_32] : memref<8x1xf32, #tpu.memory_space<vmem>>, vector<8x1xf32>
      %50 = arith.subf %48, %49 : vector<8x1xf32>
      %c0_33 = arith.constant 0 : index
      %c0_34 = arith.constant 0 : index
      %51 = vector.load %arg9[%c0_33, %c0_34] : memref<8x1xf32, #tpu.memory_space<vmem>>, vector<8x1xf32>
      %52 = arith.subf %46, %51 : vector<8x1xf32>
      %53 = vector.shape_cast %50 : vector<8x1xf32> to vector<1x8x1xf32>
      %cst_35 = arith.constant dense<0.000000e+00> : vector<1xf32>
      %54 = vector.multi_reduction <add>, %53, %cst_35 [1, 2] : vector<1x8x1xf32> to vector<1xf32>
      %55 = vector.shape_cast %54 : vector<1xf32> to vector<1x1x1xf32>
      %56 = vector.extract %55[0, 0, 0] : f32 from vector<1x1x1xf32>
      %57 = vector.shape_cast %52 : vector<8x1xf32> to vector<1x8x1xf32>
      %cst_36 = arith.constant dense<0.000000e+00> : vector<1xf32>
      %58 = vector.multi_reduction <add>, %57, %cst_36 [1, 2] : vector<1x8x1xf32> to vector<1xf32>
      %59 = vector.shape_cast %58 : vector<1xf32> to vector<1x1x1xf32>
      %60 = vector.extract %59[0, 0, 0] : f32 from vector<1x1x1xf32>
      %61 = vector.broadcast %56 : f32 to vector<1x8x128xf32>
      %c0_37 = arith.constant 0 : index
      %c0_38 = arith.constant 0 : index
      %c0_39 = arith.constant 0 : index
      %62 = vector.load %arg4[%c0_37, %c0_38, %c0_39] : memref<1x8x128xf32, #tpu.memory_space<vmem>>, vector<1x8x128xf32>
      tpu.vector_store %arg4[%c0_37, %c0_38, %c0_39], %61 {strides = array<i32>} : memref<1x8x128xf32, #tpu.memory_space<vmem>>, vector<1x8x128xf32>,
      %63 = vector.broadcast %60 : f32 to vector<1x8x128xf32>
      %c0_40 = arith.constant 0 : index
      %c0_41 = arith.constant 0 : index
      %c0_42 = arith.constant 0 : index
      %64 = vector.load %arg5[%c0_40, %c0_41, %c0_42] : memref<1x8x128xf32, #tpu.memory_space<vmem>>, vector<1x8x128xf32>
      tpu.vector_store %arg5[%c0_40, %c0_41, %c0_42], %63 {strides = array<i32>} : memref<1x8x128xf32, #tpu.memory_space<vmem>>, vector<1x8x128xf32>,
    } else {
    }
    return
  }
  func.func @transform_0(%arg0: i32, %arg1: i32) -> (i32, i32) {
    %c0_i32 = arith.constant 0 : i32
    return %arg0, %arg1 : i32, i32
  }
  func.func @transform_1(%arg0: i32, %arg1: i32) -> (i32, i32) {
    %c0_i32 = arith.constant 0 : i32
    %c0_i32_0 = arith.constant 0 : i32
    return %arg0, %c0_i32 : i32, i32
  }
  func.func @transform_2(%arg0: i32, %arg1: i32) -> (i32, i32, i32) {
    %c0_i32 = arith.constant 0 : i32
    %c0_i32_0 = arith.constant 0 : i32
    %c0_i32_1 = arith.constant 0 : i32
    return %arg0, %c0_i32, %c0_i32_0 : i32, i32, i32
  }
  func.func @transform_3(%arg0: i32, %arg1: i32) -> (i32, i32, i32) {
    %c0_i32 = arith.constant 0 : i32
    %c0_i32_0 = arith.constant 0 : i32
    %c0_i32_1 = arith.constant 0 : i32
    return %arg0, %c0_i32, %c0_i32_0 : i32, i32, i32
  }
}

</mosaic_0001>

<llo_original>
// kernel: tpu_custom_call.1
$region0: #{tpu_custom_call.1}
  #allocation0 [shape = 'u32[]', space=smem, size = 0x4, offset = 0x4, fixed_abs, tag = 'smem constant byte address 0x4 - core index']
  #allocation1 [shape = 'u32[144,128]{1,0:T(1,128)}', space=vmem, size = 0x12000, scoped, tag = 'internal scratch']
  #allocation2 [shape = 'f32[8,1]{1,0:T(8,128)}', space=vmem, size = 0x1000, scoped, tag = 'scratch operand']
  #allocation3 [shape = 'f32[8,1]{1,0:T(8,128)}', space=vmem, size = 0x1000, scoped, tag = 'scratch operand']
  #allocation4 [shape = 'f32[8,1]{1,0:T(8,128)}', space=vmem, size = 0x1000, scoped, tag = 'scratch operand']
  #allocation5 [shape = 'f32[8,1]{1,0:T(8,128)}', space=vmem, size = 0x1000, scoped, tag = 'scratch operand']
  %s0 = inlined_call_operand.vmem [shape: f32[8,32], index: 0, kind: input, shape index: {}]
  %s1 = inlined_call_operand.vmem [shape: s32[8,1], index: 1, kind: input, shape index: {}]
  %s2 = inlined_call_operand.hbm [shape: f32[1,8,128], index: 2, kind: output, shape index: {0}]
  %s3 = inlined_call_operand.hbm [shape: f32[1,8,128], index: 3, kind: output, shape index: {1}]
  %4 = xla_tuple %s2, %s3
  %s5 = sld [smem:[#allocation0]]
  $region34: #{tpu_custom_call.1} parent=0
    _
  %s7 = ssub.s32 1, %s5
  %s8 = scalar_select 0, %s7, %s5
  $region1: #{tpu_custom_call.1} parent=0
    #allocation6 [shape = 'u8[4096]{0}', space=vmem, size = 0x1000, scoped, tag = 'output window, operand 0, single buffered']
    #allocation7 [shape = 's32[1]{0}', space=sflag, size = 0x4, scoped, tag = 'scoped memory for tpu_custom_call.1']
    #allocation8 [shape = 'u8[4096]{0}', space=vmem, size = 0x1000, scoped, tag = 'output window, operand 1, single buffered']
    #allocation9 [shape = 's32[1]{0}', space=sflag, size = 0x4, scoped, tag = 'scoped memory for tpu_custom_call.1']
    %9 = vsyncpa [#allocation7], 0
    %10 = vsyncpa [#allocation9], 0
    // Predicated region
    $region2: #{tpu_custom_call.1} parent=1 // pred_check
      _
    $region3: #{tpu_custom_call.1} parent=1 // pred_check_branch
      %12 = sbr.rel (0) target = $region5
    $region4: #{tpu_custom_call.1} parent=1 // pred_region
      _
    $region5: #{tpu_custom_call.1} parent=1 // pred_fallthru
      _
    // Predicated region
    $region6: #{tpu_custom_call.1} parent=1 // pred_check
      _
    $region7: #{tpu_custom_call.1} parent=1 // pred_check_branch
      %14 = sbr.rel (0) target = $region9
    $region8: #{tpu_custom_call.1} parent=1 // pred_region
      _
    $region9: #{tpu_custom_call.1} parent=1 // pred_fallthru
      _
    %p15 = scmp.eq.s32.totalorder 0, 0
    // Predicated region
    $region10: #{tpu_custom_call.1} parent=1 // pred_check
      %p16 = pneg %p15
    $region11: #{tpu_custom_call.1} parent=1 // pred_check_branch
      %18 = sbr.rel (%p16) target = $region13
    $region12: #{tpu_custom_call.1} parent=1 // pred_region
      %vm19 = vcmask 7168
      %20 = vst.msk [vmem:[#allocation2] sm:$0xff] %vm19, -inf
      %21 = vst.msk [vmem:[#allocation3] sm:$0xff] %vm19, 0.0
      %22 = vst.msk [vmem:[#allocation4] sm:$0xff] %vm19, 0.0
      %23 = vst.msk [vmem:[#allocation5] sm:$0xff] %vm19, 0.0
    $region13: #{tpu_custom_call.1} parent=1 // pred_fallthru
      _
    %v24 = vld [vmem:[%s0] sm:$0xff]
    %s25 = smul.u32 0, 32
    %v26 = vlaneseq
    %v27 = vand.u32 %v26, 127
    %v28 = vstv %s25
    %v29 = vadd.s32 %v28, %v27
    %v30 = vld [vmem:[#allocation2] sm:$0xff]
    %vm31 = vcmask 261120
    %v32 = vsel %vm31, %v24, -inf
    %33 = vmax.xlane.f32.xlu0 %v32
    %v34 = vpop.xlane.xlu0 %33
    %v35 = vmax.f32 %v30, %v34
    %v36 = vsub.f32 %v30, %v35
    %v37 = vmul.f32 %v36, 1.442695
    %v38 = vpow.pop %v37
    %40 = vset.pattern.permute.xlu0 0
    %41 = vperm.xlu0 %40, %v35
    %v42 = vpop.permute.xlu0 %41
    %v44 = vsub.f32 %v24, %v42
    %v45 = vmul.f32 %v44, 1.442695
    %v46 = vpow.pop %v45
    %v47 = vsel %vm31, %v46, 0.0
    %48 = vadd.xlane.f32.xlu0 %v47
    %v49 = vpop.xlane.xlu0 %48
    %v50 = vld [vmem:[#allocation3] sm:$0xff]
    %v51 = vmul.f32 %v50, %v38
    %v52 = vadd.f32 %v51, %v49
    %vm53 = vcmask 7168
    %54 = vst.msk [vmem:[#allocation3] sm:$0xff] %vm53, %v52
    %55 = vst.msk [vmem:[#allocation2] sm:$0xff] %vm53, %v35
    %v56 = vld [vmem:[#allocation4] sm:$0xff]
    %v57 = vsel %vm31, %v24, 0.0
    %58 = vadd.xlane.f32.xlu0 %v57
    %v59 = vpop.xlane.xlu0 %58
    %v60 = vadd.f32 %v56, %v59
    %61 = vst.msk [vmem:[#allocation4] sm:$0xff] %vm53, %v60
    %v62 = vld [vmem:[%s1] sm:$0xff]
    %v63 = vld [vmem:[#allocation5] sm:$0xff]
    %64 = vset.pattern.permute.xlu0 0
    %65 = vperm.xlu0 %64, %v62
    %v66 = vpop.permute.xlu0 %65
    %vm67 = vcmp.eq.s32.totalorder %v29, %v66
    %v68 = vsel %vm67, %v24, 0.0
    %v69 = vsel %vm31, %v68, 0.0
    %70 = vadd.xlane.f32.xlu0 %v69
    %v71 = vpop.xlane.xlu0 %70
    %v72 = vadd.f32 %v63, %v71
    %73 = vst.msk [vmem:[#allocation5] sm:$0xff] %vm53, %v72
    // Predicated region
    $region14: #{tpu_custom_call.1} parent=1 // pred_check
      %p74 = pneg %p15
    $region15: #{tpu_custom_call.1} parent=1 // pred_check_branch
      %76 = sbr.rel (%p74) target = $region17
    $region16: #{tpu_custom_call.1} parent=1 // pred_region
      %v77 = vld [vmem:[#allocation2] sm:$0xff]
      %v78 = vld [vmem:[#allocation3] sm:$0xff]
      %v79 = vlog2.pop %v78
      %v80 = vmul.f32 %v79, 0.6931472
      %v81 = vadd.f32 %v77, %v80
      %v82 = vmul.f32 %v81, 32.0
      %v83 = vld [vmem:[#allocation4] sm:$0xff]
      %v84 = vsub.f32 %v82, %v83
      %v85 = vld [vmem:[#allocation5] sm:$0xff]
      %v86 = vsub.f32 %v81, %v85
      %v87 = vsel %vm53, %v84, 0.0
      %88 = vadd.xlane.f32.xlu0 %v87
      %v89 = vpop.xlane.xlu0 %88
      %v90 = vrot.slane %v89, 4
      %v91 = vadd.f32 %v89, %v90
      %v92 = vrot.slane %v91, 2
      %v93 = vadd.f32 %v91, %v92
      %v94 = vrot.slane %v93, 1
      %v95 = vadd.f32 %v93, %v94
      %s96 = vtos %v95
      %v97 = vsel %vm53, %v86, 0.0
      %98 = vadd.xlane.f32.xlu0 %v97
      %v99 = vpop.xlane.xlu0 %98
      %v100 = vrot.slane %v99, 4
      %v101 = vadd.f32 %v99, %v100
      %v102 = vrot.slane %v101, 2
      %v103 = vadd.f32 %v101, %v102
      %v104 = vrot.slane %v103, 1
      %v105 = vadd.f32 %v103, %v104
      %s106 = vtos %v105
      %v107 = vstv %s96
      %108 = vst [vmem:[#allocation6] sm:$0xff] %v107
      %v109 = vstv %s106
      %110 = vst [vmem:[#allocation8] sm:$0xff] %v109
    $region17: #{tpu_custom_call.1} parent=1 // pred_fallthru
      _
    // Predicated region
    $region18: #{tpu_custom_call.1} parent=1 // pred_check
      _
    $region19: #{tpu_custom_call.1} parent=1 // pred_check_branch
      %112 = sbr.rel (0) target = $region21
    $region20: #{tpu_custom_call.1} parent=1 // pred_region
      %s114 = ssub.s32 128, 128
      %115 = vsyncadd [#allocation7], %s114
      %s117 = sshll.u32 [#allocation6], 4
      %s118 = int_to_ptr.vmem [resolvable:$true] %s117
      %120 = dma.vmem_to_hbm [thread:$0]  %s118, 128, %s2, [#allocation7]
    $region21: #{tpu_custom_call.1} parent=1 // pred_fallthru
      _
    // Predicated region
    $region22: #{tpu_custom_call.1} parent=1 // pred_check
      _
    $region23: #{tpu_custom_call.1} parent=1 // pred_check_branch
      %122 = sbr.rel (0) target = $region25
    $region24: #{tpu_custom_call.1} parent=1 // pred_region
      %s124 = ssub.s32 128, 128
      %125 = vsyncadd [#allocation9], %s124
      %s127 = sshll.u32 [#allocation8], 4
      %s128 = int_to_ptr.vmem [resolvable:$true] %s127
      %130 = dma.vmem_to_hbm [thread:$0]  %s128, 128, %s3, [#allocation9]
    $region25: #{tpu_custom_call.1} parent=1 // pred_fallthru
      _
    // Predicated region
    $region26: #{tpu_custom_call.1} parent=1 // pred_check
      _
    $region27: #{tpu_custom_call.1} parent=1 // pred_check_branch
      %132 = sbr.rel (0) target = $region29
    $region28: #{tpu_custom_call.1} parent=1 // pred_region
      %133 = dma.done [#allocation7], 128
    $region29: #{tpu_custom_call.1} parent=1 // pred_fallthru
      _
    // Predicated region
    $region30: #{tpu_custom_call.1} parent=1 // pred_check
      _
    $region31: #{tpu_custom_call.1} parent=1 // pred_check_branch
      %135 = sbr.rel (0) target = $region33
    $region32: #{tpu_custom_call.1} parent=1 // pred_region
      %136 = dma.done [#allocation9], 128
    $region33: #{tpu_custom_call.1} parent=1 // pred_fallthru
      _
    %137 = vsyncpa [#allocation7], 1
    %138 = vsyncpa [#allocation9], 1

</llo_original>
